<compile_context>
chip_gen: v6e
topology: v6e:2x2x1
jax: 0.10.0
libtpu: 0.0.40
codegen_flags: <defaults>
</compile_context>

<pallas_src>
import functools
import math

import jax
import jax.numpy as jnp
from jax.experimental import pallas as pl
from jax.experimental.pallas import tpu as pltpu

HIDDEN = 32
BN_EPS = 1e-5
_VMEM_LIMIT = 32 * 1024 * 1024  # safe on v5e (128 MiB), v6e (128 MiB), v7x (64 MiB)


def _round_up(x, m):
    return ((x + m - 1) // m) * m


# --------------------------------------------------------------------------
# Pass 1: accumulate per-feature sum(h) and sum(h*h) over the whole batch.
# --------------------------------------------------------------------------
def _rho_stats_kernel(x_ref, w1_ref, b1_ref, sum_ref, sumsq_ref, *,
                      n_total, tile_n):
    i = pl.program_id(0)

    @pl.when(i == 0)
    def _():
        sum_ref[...] = jnp.zeros_like(sum_ref)
        sumsq_ref[...] = jnp.zeros_like(sumsq_ref)

    x = x_ref[...].astype(jnp.float32)
    h = jnp.dot(x, w1_ref[...], preferred_element_type=jnp.float32)
    h = h + b1_ref[...]

    # Mask rows past the true batch size (ragged last tile): padded input rows
    # contain unspecified data and must not contribute to the statistics.
    row = i * tile_n + jax.lax.broadcasted_iota(jnp.int32, (tile_n, 1), 0)
    hm = jnp.where(row < n_total, h, 0.0)

    sum_ref[...] += jnp.sum(hm, axis=0, keepdims=True)
    sumsq_ref[...] += jnp.sum(hm * hm, axis=0, keepdims=True)


# --------------------------------------------------------------------------
# Pass 2: recompute Linear1 per tile, apply BN(scale/shift) + ReLU + Linear2.
# --------------------------------------------------------------------------
def _rho_apply_kernel(x_ref, w1_ref, b1_ref, gamma_ref, beta_ref, w2_ref,
                      b2_ref, sum_ref, sumsq_ref, o_ref, *, n_total):
    inv_n = 1.0 / float(n_total)
    mean = sum_ref[...] * inv_n                              # (1, H)
    var = jnp.maximum(sumsq_ref[...] * inv_n - mean * mean, 0.0)
    inv_std = jax.lax.rsqrt(var + BN_EPS)
    scale = inv_std * gamma_ref[...]                         # (1, H) folded BN scale
    shift = beta_ref[...] - mean * scale                     # (1, H) folded BN shift

    x = x_ref[...].astype(jnp.float32)
    h = jnp.dot(x, w1_ref[...], preferred_element_type=jnp.float32)
    h = h + b1_ref[...]
    h = jnp.maximum(h * scale + shift, 0.0)                  # BN + ReLU

    out = jnp.dot(h, w2_ref[...], preferred_element_type=jnp.float32)
    out = out + b2_ref[...]
    o_ref[...] = out.astype(o_ref.dtype)


# --------------------------------------------------------------------------
# Wrapper
# --------------------------------------------------------------------------
def rho_forward(x, params, *, tile_n=1024):
    """x: (N, Cin) float32. params: dict of kernel parameters."""
    n, cin = x.shape
    hid = params["w1"].shape[1]
    cout = params["w2"].shape[1]

    tile_n = min(tile_n, max(8, _round_up(n, 8)))
    grid = (pl.cdiv(n, tile_n),)

    small = lambda shape: pl.BlockSpec(shape, lambda i: (0, 0))  # full-array block

    # ----- Pass 1: batch statistics (sequential accumulation over N tiles) --
    sums, sumsq = pl.pallas_call(
        functools.partial(_rho_stats_kernel, n_total=n, tile_n=tile_n),
        out_shape=(jax.ShapeDtypeStruct((1, hid), jnp.float32),
                   jax.ShapeDtypeStruct((1, hid), jnp.float32)),
        grid=grid,
        in_specs=[pl.BlockSpec((tile_n, cin), lambda i: (i, 0)),
                  small((cin, hid)),
                  small((1, hid))],
        out_specs=(small((1, hid)), small((1, hid))),
        compiler_params=pltpu.CompilerParams(
            dimension_semantics=("arbitrary",),
            vmem_limit_bytes=_VMEM_LIMIT),
    )(x, params["w1"], params["b1"])

    # ----- Pass 2: apply BN + ReLU + Linear2 (independent per tile) ---------
    out = pl.pallas_call(
        functools.partial(_rho_apply_kernel, n_total=n),
        out_shape=jax.ShapeDtypeStruct((n, cout), x.dtype),
        grid=grid,
        in_specs=[pl.BlockSpec((tile_n, cin), lambda i: (i, 0)),
                  small((cin, hid)),
                  small((1, hid)),
                  small((1, hid)),
                  small((1, hid)),
                  small((hid, cout)),
                  small((1, cout)),
                  small((1, hid)),
                  small((1, hid))],
        out_specs=pl.BlockSpec((tile_n, cout), lambda i: (i, 0)),
        compiler_params=pltpu.CompilerParams(
            dimension_semantics=("parallel",),   # megacore sharding on v7x
            vmem_limit_bytes=_VMEM_LIMIT),
    )(x, params["w1"], params["b1"], params["gamma"], params["beta"],
      params["w2"], params["b2"], sums, sumsq)
    return out


def init_rho_params(key, in_channels, out_channels):
    """Deterministic init mirroring PyTorch nn.Linear defaults
    (uniform(-1/sqrt(fan_in), 1/sqrt(fan_in))) and BatchNorm1d defaults."""
    k1, k2, k3, k4 = jax.random.split(key, 4)

    bound1 = 1.0 / math.sqrt(in_channels)
    w1 = jax.random.uniform(k1, (in_channels, HIDDEN), jnp.float32,
                            -bound1, bound1)                 # pre-transposed
    b1 = jax.random.uniform(k2, (1, HIDDEN), jnp.float32, -bound1, bound1)

    bound2 = 1.0 / math.sqrt(HIDDEN)
    w2 = jax.random.uniform(k3, (HIDDEN, out_channels), jnp.float32,
                            -bound2, bound2)                 # pre-transposed
    b2 = jax.random.uniform(k4, (1, out_channels), jnp.float32,
                            -bound2, bound2)

    gamma = jnp.ones((1, HIDDEN), jnp.float32)
    beta = jnp.zeros((1, HIDDEN), jnp.float32)

    return {"w1": w1, "b1": b1, "gamma": gamma, "beta": beta,
            "w2": w2, "b2": b2}


def rho_reference(x, params):
    """Plain-JAX reference for correctness checking."""
    h = x @ params["w1"] + params["b1"]
    mean = jnp.mean(h, axis=0, keepdims=True)
    var = jnp.mean((h - mean) ** 2, axis=0, keepdims=True)
    h = (h - mean) / jnp.sqrt(var + BN_EPS) * params["gamma"] + params["beta"]
    h = jnp.maximum(h, 0.0)
    return h @ params["w2"] + params["b2"]


if __name__ == "__main__":
    key = jax.random.PRNGKey(0)
    k_param, k_x1, k_x2 = jax.random.split(key, 3)

    in_channels = 16
    out_channels = 8
    params = init_rho_params(k_param, in_channels, out_channels)

    # Small case (single tile).
    batch = 8
    x = jax.random.normal(k_x1, (batch, in_channels), jnp.float32)
    out = jax.block_until_ready(rho_forward(x, params))
    ref = rho_reference(x, params)
    assert out.shape == (batch, out_channels)
    assert jnp.allclose(out, ref, atol=1e-4, rtol=1e-4), "mismatch vs reference (small)"

    # Larger case exercising multiple tiles + ragged last tile masking.
    batch2 = 2050
    x2 = jax.random.normal(k_x2, (batch2, in_channels), jnp.float32)
    out2 = jax.block_until_ready(rho_forward(x2, params, tile_n=1024))
    ref2 = rho_reference(x2, params)
    assert out2.shape == (batch2, out_channels)
    assert jnp.allclose(out2, ref2, atol=1e-3, rtol=1e-3), "mismatch vs reference (tiled)"

    print("KERNEL_OK")
</pallas_src>

<mosaic_0001>
module attributes {stable_mosaic.version = 11 : i64} {
  func.func @_rho_stats_kernel(%arg0: i32, %arg1: memref<8x16xf32, #tpu.memory_space<vmem>>, %arg2: memref<16x32xf32, #tpu.memory_space<vmem>>, %arg3: memref<1x32xf32, #tpu.memory_space<vmem>>, %arg4: memref<1x32xf32, #tpu.memory_space<vmem>>, %arg5: memref<1x32xf32, #tpu.memory_space<vmem>>) attributes {dimension_semantics = [#tpu.dimension_semantics<arbitrary>], iteration_bounds = array<i64: 1>, scalar_prefetch = 0 : i64, scratch_operands = 0 : i64, tpu.core_type = #tpu.core_type<tc>, window_params = [{transform_indices = @transform_0, window_bounds = array<i64: 8, 16>}, {pipeline_mode = #tpu.pipeline_mode<synchronous>, transform_indices = @transform_1, window_bounds = array<i64: 16, 32>}, {pipeline_mode = #tpu.pipeline_mode<synchronous>, transform_indices = @transform_2, window_bounds = array<i64: 1, 32>}, {pipeline_mode = #tpu.pipeline_mode<synchronous>, transform_indices = @transform_3, window_bounds = array<i64: 1, 32>}, {pipeline_mode = #tpu.pipeline_mode<synchronous>, transform_indices = @transform_4, window_bounds = array<i64: 1, 32>}]} {
    %c0_i32 = arith.constant 0 : i32
    %0 = arith.cmpi eq, %arg0, %c0_i32 : i32
    %1 = arith.extui %0 : i1 to i32
    %c0_i32_0 = arith.constant 0 : i32
    %2 = arith.cmpi ne, %1, %c0_i32_0 : i32
    scf.if %2 {
      %cst_18 = arith.constant 0.000000e+00 : f32
      %30 = vector.broadcast %cst_18 : f32 to vector<1x32xf32>
      %c0_19 = arith.constant 0 : index
      %c0_20 = arith.constant 0 : index
      %31 = vector.load %arg4[%c0_19, %c0_20] : memref<1x32xf32, #tpu.memory_space<vmem>>, vector<1x32xf32>
      tpu.vector_store %arg4[%c0_19, %c0_20], %30 {strides = array<i32>} : memref<1x32xf32, #tpu.memory_space<vmem>>, vector<1x32xf32>,
      %cst_21 = arith.constant 0.000000e+00 : f32
      %32 = vector.broadcast %cst_21 : f32 to vector<1x32xf32>
      %c0_22 = arith.constant 0 : index
      %c0_23 = arith.constant 0 : index
      %33 = vector.load %arg5[%c0_22, %c0_23] : memref<1x32xf32, #tpu.memory_space<vmem>>, vector<1x32xf32>
      tpu.vector_store %arg5[%c0_22, %c0_23], %32 {strides = array<i32>} : memref<1x32xf32, #tpu.memory_space<vmem>>, vector<1x32xf32>,
    } else {
    }
    %c0 = arith.constant 0 : index
    %c0_1 = arith.constant 0 : index
    %3 = vector.load %arg1[%c0, %c0_1] : memref<8x16xf32, #tpu.memory_space<vmem>>, vector<8x16xf32>
    %c0_2 = arith.constant 0 : index
    %c0_3 = arith.constant 0 : index
    %4 = vector.load %arg2[%c0_2, %c0_3] : memref<16x32xf32, #tpu.memory_space<vmem>>, vector<16x32xf32>
    %cst = arith.constant dense<0.000000e+00> : vector<8x32xf32>
    %5 = tpu.matmul %3, %4, %cst {dimension_numbers = #tpu.dot_dimension_numbers<[1], [0], [0], [1], [0, 0, 1, 1], [], []>} : vector<8x16xf32>, vector<16x32xf32>, vector<8x32xf32> -> vector<8x32xf32>
    %c0_4 = arith.constant 0 : index
    %c0_5 = arith.constant 0 : index
    %6 = vector.load %arg3[%c0_4, %c0_5] : memref<1x32xf32, #tpu.memory_space<vmem>>, vector<1x32xf32>
    %7 = vector.broadcast %6 : vector<1x32xf32> to vector<8x32xf32>
    %8 = arith.addf %5, %7 : vector<8x32xf32>
    %c8_i32 = arith.constant 8 : i32
    %9 = arith.muli %arg0, %c8_i32 : i32
    %10 = tpu.iota {dimensions = array<i32: 0>} : vector<8x1xi32>
    %11 = vector.broadcast %9 : i32 to vector<8x1xi32>
    %12 = arith.addi %11, %10 : vector<8x1xi32>
    %c8_i32_6 = arith.constant 8 : i32
    %13 = vector.broadcast %c8_i32_6 : i32 to vector<8x1xi32>
    %14 = arith.cmpi slt, %12, %13 : vector<8x1xi32>
    %cst_7 = arith.constant 0.000000e+00 : f32
    %15 = vector.shape_cast %14 : vector<8x1xi1> to vector<8x1xi1>
    %16 = vector.broadcast %15 : vector<8x1xi1> to vector<8x32xi1>
    %17 = vector.broadcast %cst_7 : f32 to vector<8x32xf32>
    %18 = arith.select %16, %8, %17 : vector<8x32xi1>, vector<8x32xf32>
    %c0_8 = arith.constant 0 : index
    %c0_9 = arith.constant 0 : index
    %19 = vector.load %arg4[%c0_8, %c0_9] : memref<1x32xf32, #tpu.memory_space<vmem>>, vector<1x32xf32>
    %cst_10 = arith.constant dense<0.000000e+00> : vector<32xf32>
    %20 = vector.multi_reduction <add>, %18, %cst_10 [0] : vector<8x32xf32> to vector<32xf32>
    %21 = vector.shape_cast %20 : vector<32xf32> to vector<1x32xf32>
    %22 = arith.addf %19, %21 : vector<1x32xf32>
    %c0_11 = arith.constant 0 : index
    %c0_12 = arith.constant 0 : index
    %23 = vector.load %arg4[%c0_11, %c0_12] : memref<1x32xf32, #tpu.memory_space<vmem>>, vector<1x32xf32>
    tpu.vector_store %arg4[%c0_11, %c0_12], %22 {strides = array<i32>} : memref<1x32xf32, #tpu.memory_space<vmem>>, vector<1x32xf32>,
    %c0_13 = arith.constant 0 : index
    %c0_14 = arith.constant 0 : index
    %24 = vector.load %arg5[%c0_13, %c0_14] : memref<1x32xf32, #tpu.memory_space<vmem>>, vector<1x32xf32>
    %25 = arith.mulf %18, %18 : vector<8x32xf32>
    %cst_15 = arith.constant dense<0.000000e+00> : vector<32xf32>
    %26 = vector.multi_reduction <add>, %25, %cst_15 [0] : vector<8x32xf32> to vector<32xf32>
    %27 = vector.shape_cast %26 : vector<32xf32> to vector<1x32xf32>
    %28 = arith.addf %24, %27 : vector<1x32xf32>
    %c0_16 = arith.constant 0 : index
    %c0_17 = arith.constant 0 : index
    %29 = vector.load %arg5[%c0_16, %c0_17] : memref<1x32xf32, #tpu.memory_space<vmem>>, vector<1x32xf32>
    tpu.vector_store %arg5[%c0_16, %c0_17], %28 {strides = array<i32>} : memref<1x32xf32, #tpu.memory_space<vmem>>, vector<1x32xf32>,
    return
  }
  func.func @transform_0(%arg0: i32) -> (i32, i32) {
    %c0_i32 = arith.constant 0 : i32
    %c0_i32_0 = arith.constant 0 : i32
    return %arg0, %c0_i32 : i32, i32
  }
  func.func @transform_1(%arg0: i32) -> (i32, i32) {
    %c0_i32 = arith.constant 0 : i32
    %c0_i32_0 = arith.constant 0 : i32
    %c0_i32_1 = arith.constant 0 : i32
    return %c0_i32, %c0_i32_0 : i32, i32
  }
  func.func @transform_2(%arg0: i32) -> (i32, i32) {
    %c0_i32 = arith.constant 0 : i32
    %c0_i32_0 = arith.constant 0 : i32
    %c0_i32_1 = arith.constant 0 : i32
    return %c0_i32, %c0_i32_0 : i32, i32
  }
  func.func @transform_3(%arg0: i32) -> (i32, i32) {
    %c0_i32 = arith.constant 0 : i32
    %c0_i32_0 = arith.constant 0 : i32
    %c0_i32_1 = arith.constant 0 : i32
    return %c0_i32, %c0_i32_0 : i32, i32
  }
  func.func @transform_4(%arg0: i32) -> (i32, i32) {
    %c0_i32 = arith.constant 0 : i32
    %c0_i32_0 = arith.constant 0 : i32
    %c0_i32_1 = arith.constant 0 : i32
    return %c0_i32, %c0_i32_0 : i32, i32
  }
}

</mosaic_0001>

<llo_original>
// kernel: tpu_custom_call.1
$region0: #{tpu_custom_call.1}
  #allocation0 [shape = 'u32[]', space=smem, size = 0x4, offset = 0x4, fixed_abs, tag = 'smem constant byte address 0x4 - core index']
  #allocation1 [shape = 'u32[144,128]{1,0:T(1,128)}', space=vmem, size = 0x12000, scoped, tag = 'internal scratch']
  %s0 = inlined_call_operand.hbm [shape: f32[8,16], index: 0, kind: input, shape index: {}]
  %s1 = inlined_call_operand.hbm [shape: f32[16,32], index: 1, kind: input, shape index: {}]
  %s2 = inlined_call_operand.vmem [shape: f32[1,32], index: 2, kind: input, shape index: {}]
  %s3 = inlined_call_operand.hbm [shape: f32[1,32], index: 3, kind: output, shape index: {0}]
  %s4 = inlined_call_operand.hbm [shape: f32[1,32], index: 4, kind: output, shape index: {1}]
  %5 = xla_tuple %s3, %s4
  %s6 = sld [smem:[#allocation0]]
  $region42: #{tpu_custom_call.1} parent=0
    _
  %s8 = ssub.s32 1, %s6
  %s9 = scalar_select 0, %s8, %s6
  $region1: #{tpu_custom_call.1} parent=0
    #allocation2 [shape = 'u8[4096]{0}', space=vmem, size = 0x1000, scoped, tag = 'input window, operand 0, single buffered']
    #allocation3 [shape = 's32[1]{0}', space=sflag, size = 0x4, scoped, tag = 'scoped memory for tpu_custom_call.1']
    #allocation4 [shape = 's32[1]{0}', space=sflag, size = 0x4, scoped, tag = 'scoped memory for tpu_custom_call.1']
    #allocation5 [shape = 'u8[8192]{0}', space=vmem, size = 0x2000, scoped, tag = 'input window, operand 1, single buffered']
    #allocation6 [shape = 's32[1]{0}', space=sflag, size = 0x4, scoped, tag = 'scoped memory for tpu_custom_call.1']
    #allocation7 [shape = 'u8[512]{0}', space=vmem, size = 0x400, scoped, tag = 'output window, operand 0, single buffered']
    #allocation8 [shape = 'u8[512]{0}', space=vmem, size = 0x400, scoped, tag = 'output window, operand 1, single buffered']
    #allocation9 [shape = 's32[1]{0}', space=sflag, size = 0x4, scoped, tag = 'scoped memory for tpu_custom_call.1']
    %10 = vsyncpa [#allocation3], 0
    %11 = vsyncpa [#allocation6], 0
    %12 = vsyncpa [#allocation4], 0
    %13 = vsyncpa [#allocation9], 0
    // Predicated region
    $region2: #{tpu_custom_call.1} parent=1 // pred_check
      _
    $region3: #{tpu_custom_call.1} parent=1 // pred_check_branch
      %15 = sbr.rel (0) target = $region5
    $region4: #{tpu_custom_call.1} parent=1 // pred_region
      %s17 = ssub.s32 128, 128
      %18 = vsyncadd [#allocation3], %s17
      %s20 = sshll.u32 [#allocation2], 4
      %s21 = int_to_ptr.vmem [resolvable:$true] %s20
      %23 = dma.hbm_to_vmem [thread:$0]  %s0, 128, %s21, [#allocation3]
    $region5: #{tpu_custom_call.1} parent=1 // pred_fallthru
      _
    // Predicated region
    $region6: #{tpu_custom_call.1} parent=1 // pred_check
      _
    $region7: #{tpu_custom_call.1} parent=1 // pred_check_branch
      %25 = sbr.rel (0) target = $region9
    $region8: #{tpu_custom_call.1} parent=1 // pred_region
      %s27 = ssub.s32 256, 256
      %28 = vsyncadd [#allocation6], %s27
      %s29 = sshll.u32 [#allocation5], 4
      %s30 = int_to_ptr.vmem [resolvable:$true] %s29
      %35 = dma.hbm_to_vmem [thread:$0]  %s1, 256, %s30, [#allocation6], 128, 128, 8
    $region9: #{tpu_custom_call.1} parent=1 // pred_fallthru
      _
    // Predicated region
    $region10: #{tpu_custom_call.1} parent=1 // pred_check
      _
    $region11: #{tpu_custom_call.1} parent=1 // pred_check_branch
      %37 = sbr.rel (0) target = $region13
    $region12: #{tpu_custom_call.1} parent=1 // pred_region
      _
    $region13: #{tpu_custom_call.1} parent=1 // pred_fallthru
      _
    // Predicated region
    $region14: #{tpu_custom_call.1} parent=1 // pred_check
      _
    $region15: #{tpu_custom_call.1} parent=1 // pred_check_branch
      %39 = sbr.rel (0) target = $region17
    $region16: #{tpu_custom_call.1} parent=1 // pred_region
      %40 = dma.done [#allocation3], 128
    $region17: #{tpu_custom_call.1} parent=1 // pred_fallthru
      _
    // Predicated region
    $region18: #{tpu_custom_call.1} parent=1 // pred_check
      _
    $region19: #{tpu_custom_call.1} parent=1 // pred_check_branch
      %42 = sbr.rel (0) target = $region21
    $region20: #{tpu_custom_call.1} parent=1 // pred_region
      %43 = dma.done [#allocation6], 256
    $region21: #{tpu_custom_call.1} parent=1 // pred_fallthru
      _
    %p44 = scmp.eq.s32.totalorder 0, 0
    // Predicated region
    $region22: #{tpu_custom_call.1} parent=1 // pred_check
      %p45 = pneg %p44
    $region23: #{tpu_custom_call.1} parent=1 // pred_check_branch
      %47 = sbr.rel (%p45) target = $region25
    $region24: #{tpu_custom_call.1} parent=1 // pred_region
      %vm48 = vcmask 253952
      %49 = vst.msk [vmem:[#allocation7] sm:$0x1] %vm48, 0.0
      %50 = vst.msk [vmem:[#allocation8] sm:$0x1] %vm48, 0.0
    $region25: #{tpu_custom_call.1} parent=1 // pred_fallthru
      _
    %v51 = vld [vmem:[#allocation2] sm:$0xff]
    %v52 = vld [vmem:[#allocation5] sm:$0xff]
    %v53 = vld [vmem:[#allocation5 + $0x8] sm:$0xff]
    %v54 = vld [vmem:[%s2] sm:$0x1]
    %v56 = vlaneseq
    %v57 = vshrl.u32 %v56, 7
    %v58 = vsub.s32 0, %v57
    %v59 = vrot.slane %v54, %v58
    %vm61 = vcmask 130048
    %v63 = vsel %vm61, %v51, 0
    %65 = vmatprep.subr.mxu0 0.0
    %66 = vmatpush1.msra.mxu0 0.0
    %67 = vmatprep.subr.mxu0 0.0
    %68 = vmatpush1.msra.mxu0 0.0
    %69 = vmatprep.subr.mxu0 0.0
    %70 = vmatpush1.msra.mxu0 0.0
    %71 = vmatprep.subr.mxu0 0.0
    %72 = vmatpush1.msra.mxu0 0.0
    %73 = vmatprep.subr.mxu0 0.0
    %74 = vmatpush1.msra.mxu0 0.0
    %75 = vmatprep.subr.mxu0 0.0
    %76 = vmatpush1.msra.mxu0 0.0
    %77 = vmatprep.subr.mxu0 0.0
    %78 = vmatpush1.msra.mxu0 0.0
    %79 = vmatprep.subr.mxu0 0.0
    %80 = vmatpush1.msra.mxu0 0.0
    %81 = vmatprep.subr.mxu0 0.0
    %82 = vmatpush1.msra.mxu0 0.0
    %83 = vmatprep.subr.mxu0 0.0
    %84 = vmatpush1.msra.mxu0 0.0
    %85 = vmatprep.subr.mxu0 0.0
    %86 = vmatpush1.msra.mxu0 0.0
    %87 = vmatprep.subr.mxu0 0.0
    %88 = vmatpush1.msra.mxu0 0.0
    %89 = vmatprep.subr.mxu0 0.0
    %90 = vmatpush1.msra.mxu0 0.0
    %91 = vmatprep.subr.mxu0 0.0
    %92 = vmatpush1.msra.mxu0 0.0
    %93 = vmatprep.subr.mxu0 0.0
    %94 = vmatpush1.msra.mxu0 %v53
    %95 = vmatprep.subr.mxu0 0.0
    %96 = vmatpush1.msra.mxu0 %v52
    %97 = vmatprep.subr.mxu0 0.0
    %98 = vmatpush2.msra.mxu0 0.0
    %99 = vmatprep.subr.mxu0 0.0
    %100 = vmatpush2.msra.mxu0 0.0
    %101 = vmatprep.subr.mxu0 0.0
    %102 = vmatpush2.msra.mxu0 0.0
    %103 = vmatprep.subr.mxu0 0.0
    %104 = vmatpush2.msra.mxu0 0.0
    %105 = vmatprep.subr.mxu0 0.0
    %106 = vmatpush2.msra.mxu0 0.0
    %107 = vmatprep.subr.mxu0 0.0
    %108 = vmatpush2.msra.mxu0 0.0
    %109 = vmatprep.subr.mxu0 0.0
    %110 = vmatpush2.msra.mxu0 0.0
    %111 = vmatprep.subr.mxu0 0.0
    %112 = vmatpush2.msra.mxu0 0.0
    %113 = vmatprep.subr.mxu0 0.0
    %114 = vmatpush2.msra.mxu0 0.0
    %115 = vmatprep.subr.mxu0 0.0
    %116 = vmatpush2.msra.mxu0 0.0
    %117 = vmatprep.subr.mxu0 0.0
    %118 = vmatpush2.msra.mxu0 0.0
    %119 = vmatprep.subr.mxu0 0.0
    %120 = vmatpush2.msra.mxu0 0.0
    %121 = vmatprep.subr.mxu0 0.0
    %122 = vmatpush2.msra.mxu0 0.0
    %123 = vmatprep.subr.mxu0 0.0
    %124 = vmatpush2.msra.mxu0 0.0
    %125 = vmatprep.subr.mxu0 0.0
    %126 = vmatpush2.msra.mxu0 0.0
    %127 = vmatprep.subr.mxu0 0.0
    %128 = vmatpush2.msra.mxu0 0.0
    %129 = vmatprep.mubr.f32.mxu0 0.0
    %130 = vmatmul.mubr.f32.gmra.mxu0 %v63
    %v131 = vpop.f32.mrf.mxu0
    %v132 = vadd.f32 %v59, %v131
    %v133 = vpop.f32.mrf.mxu0
    %134 = vdwg.mxu0
    %s135 = smul.u32 0, 8
    %v136 = vlaneseq
    %v137 = vshrl.u32 %v136, 7
    %v138 = vstv %s135
    %v139 = vadd.s32 %v138, %v137
    %vm140 = vcmp.lt.s32.totalorder %v139, 8
    %v141 = vsel %vm140, 1, 0
    %vm142 = vcmp.eq.s32.totalorder %v141, 1
    %v143 = vsel %vm142, %v132, 0.0
    %v144 = vld [vmem:[#allocation7] sm:$0x1]
    %vm145 = vcmask 261120
    %v146 = vsel %vm145, %v143, 0.0
    %v147 = vrot.slane %v146, 4
    %v148 = vadd.f32 %v146, %v147
    %v149 = vrot.slane %v148, 2
    %v150 = vadd.f32 %v148, %v149
    %v151 = vrot.slane %v150, 1
    %v152 = vadd.f32 %v150, %v151
    %v153 = vadd.f32 %v144, %v152
    %vm154 = vcmask 253952
    %155 = vst.msk [vmem:[#allocation7] sm:$0x1] %vm154, %v153
    %v156 = vld [vmem:[#allocation8] sm:$0x1]
    %v157 = vmul.f32 %v143, %v143
    %v158 = vsel %vm145, %v157, 0.0
    %v159 = vrot.slane %v158, 4
    %v160 = vadd.f32 %v158, %v159
    %v161 = vrot.slane %v160, 2
    %v162 = vadd.f32 %v160, %v161
    %v163 = vrot.slane %v162, 1
    %v164 = vadd.f32 %v162, %v163
    %v165 = vadd.f32 %v156, %v164
    %166 = vst.msk [vmem:[#allocation8] sm:$0x1] %vm154, %v165
    // Predicated region
    $region26: #{tpu_custom_call.1} parent=1 // pred_check
      _
    $region27: #{tpu_custom_call.1} parent=1 // pred_check_branch
      %168 = sbr.rel (0) target = $region29
    $region28: #{tpu_custom_call.1} parent=1 // pred_region
      %s170 = ssub.s32 16, 16
      %171 = vsyncadd [#allocation4], %s170
      %s173 = sshll.u32 [#allocation7], 4
      %s174 = int_to_ptr.vmem [resolvable:$true] %s173
      %176 = dma.vmem_to_hbm [thread:$0]  %s174, 16, %s3, [#allocation4]
    $region29: #{tpu_custom_call.1} parent=1 // pred_fallthru
      _
    // Predicated region
    $region30: #{tpu_custom_call.1} parent=1 // pred_check
      _
    $region31: #{tpu_custom_call.1} parent=1 // pred_check_branch
      %178 = sbr.rel (0) target = $region33
    $region32: #{tpu_custom_call.1} parent=1 // pred_region
      %s180 = ssub.s32 16, 16
      %181 = vsyncadd [#allocation9], %s180
      %s183 = sshll.u32 [#allocation8], 4
      %s184 = int_to_ptr.vmem [resolvable:$true] %s183
      %186 = dma.vmem_to_hbm [thread:$0]  %s184, 16, %s4, [#allocation9]
    $region33: #{tpu_custom_call.1} parent=1 // pred_fallthru
      _
    // Predicated region
    $region34: #{tpu_custom_call.1} parent=1 // pred_check
      _
    $region35: #{tpu_custom_call.1} parent=1 // pred_check_branch
      %188 = sbr.rel (0) target = $region37
    $region36: #{tpu_custom_call.1} parent=1 // pred_region
      %189 = dma.done [#allocation4], 16
    $region37: #{tpu_custom_call.1} parent=1 // pred_fallthru
      _
    // Predicated region
    $region38: #{tpu_custom_call.1} parent=1 // pred_check
      _
    $region39: #{tpu_custom_call.1} parent=1 // pred_check_branch
      %191 = sbr.rel (0) target = $region41
    $region40: #{tpu_custom_call.1} parent=1 // pred_region
      %192 = dma.done [#allocation9], 16
    $region41: #{tpu_custom_call.1} parent=1 // pred_fallthru
      _
    %193 = vsyncpa [#allocation3], 1
    %194 = vsyncpa [#allocation6], 1
    %195 = vsyncpa [#allocation4], 1
    %196 = vsyncpa [#allocation9], 1

</llo_original>
